<compile_context>
chip_gen: v6e
topology: v6e:2x2x1
jax: 0.10.0
libtpu: 0.0.40
codegen_flags: <defaults>
</compile_context>

<pallas_src>
import functools

import numpy as np
import jax
import jax.numpy as jnp
from jax.experimental import pallas as pl
from jax.experimental.pallas import tpu as pltpu


# ----------------------------- problem sizes -----------------------------
B = 8             # batch
C, H, W = 4, 8, 8
D0 = C * H * W    # 256 (fc1 in_features, after Flatten)
H1 = 256          # fc1 out_features / fc2 in_features
H2 = 256          # fc2 out_features / fc3 in_features
DOUT = 10         # fc3 out_features
OUT_PAD = 128     # lane-dense padded output width
BS = 128          # BSR block size (lane-aligned)
NBR = H2 // BS    # block rows of fc2 weight
NBC = H1 // BS    # block cols of fc2 weight


# ------------------------- BSR conversion (glue) --------------------------
def to_bsr(W_dense, bs):
    """Dense (out, in) weight -> (crow_indices, col_indices, values)."""
    out_f, in_f = W_dense.shape
    nbr, nbc = out_f // bs, in_f // bs
    crow = [0]
    cols, vals = [], []
    for r in range(nbr):
        for c in range(nbc):
            blk = W_dense[r * bs:(r + 1) * bs, c * bs:(c + 1) * bs]
            if np.any(blk != 0.0):
                cols.append(c)
                vals.append(blk)
        crow.append(len(cols))
    return (np.asarray(crow, np.int32),
            np.asarray(cols, np.int32),
            np.stack(vals).astype(np.float32))


# ------------------------------ Pallas kernel -----------------------------
def _blocked_mlp_kernel(x_ref, w1t_ref, b1_ref,      # fc1
                        valst_ref, b2_ref,           # fc2 (BSR, static pattern)
                        w3t_ref, b3_ref,             # fc3 (lane-padded)
                        out_ref,                     # (batch, OUT_PAD)
                        *, batch, bs, crow, col):
    f32 = jnp.float32

    # ---- fc1 + ReLU (value-level, stays in vregs) --------------------------
    h1 = jnp.maximum(
        jnp.dot(x_ref[...], w1t_ref[...], preferred_element_type=f32)
        + b1_ref[...], 0.0)

    # ---- SparseBSRLinear (fc2) + ReLU, statically unrolled ------------------
    nbr = len(crow) - 1
    h2_blocks = []
    for r in range(nbr):
        bias_r = b2_ref[:, r * bs:(r + 1) * bs]          # (1, bs), static slice
        terms = []
        for k in range(crow[r], crow[r + 1]):
            c = col[k]
            xb = h1[:, c * bs:(c + 1) * bs]              # static lane slice
            terms.append(jnp.dot(xb, valst_ref[k],       # per-block W.T
                                 preferred_element_type=f32))
        if terms:
            acc = terms[0] + bias_r                      # bias folded into init
            for t in terms[1:]:
                acc = acc + t
        else:
            acc = jnp.broadcast_to(bias_r, (batch, bs))  # empty block row
        h2_blocks.append(jnp.maximum(acc, 0.0))
    h2 = jnp.concatenate(h2_blocks, axis=-1)             # (batch, H2)

    # ---- fc3 (lane-padded to OUT_PAD, lane-dense store) ---------------------
    out_ref[...] = (jnp.dot(h2, w3t_ref[...], preferred_element_type=f32)
                    + b3_ref[...])


def blocked_mlp_forward(x_nchw, params, crow, col):
    """x_nchw: (B, C, H, W) float32. Returns (B, DOUT) float32."""
    vals_t, w1t, b1, b2, w3t_pad, b3_pad = params
    x_flat = x_nchw.reshape(x_nchw.shape[0], -1)   # nn.Flatten over (C, H, W)
    batch = x_flat.shape[0]

    kernel = functools.partial(
        _blocked_mlp_kernel,
        batch=batch, bs=BS,
        crow=tuple(int(v) for v in crow),
        col=tuple(int(v) for v in col))

    vmem = pl.BlockSpec(memory_space=pltpu.MemorySpace.VMEM)

    out_pad = pl.pallas_call(
        kernel,
        out_shape=jax.ShapeDtypeStruct((batch, OUT_PAD), jnp.float32),
        in_specs=[vmem, vmem, vmem,    # x_flat, w1t, b1
                  vmem, vmem,          # vals_t, b2
                  vmem, vmem],         # w3t_pad, b3_pad
        out_specs=vmem,
    )(x_flat, w1t, b1, vals_t, b2, w3t_pad, b3_pad)

    return out_pad[:, :DOUT]           # slice back to the real 10 outputs


# --------------------------------- main ------------------------------------
if __name__ == "__main__":
    key = jax.random.PRNGKey(0)
    k_x, k_w1, k_b1, k_w2, k_b2, k_w3, k_b3 = jax.random.split(key, 7)

    # Deterministic "trained model" parameters (PyTorch Linear convention:
    # weight shape (out_features, in_features), y = x @ W.T + b).
    x = jax.random.normal(k_x, (B, C, H, W), jnp.float32)
    W1 = jax.random.normal(k_w1, (H1, D0), jnp.float32) * 0.05
    b1 = jax.random.normal(k_b1, (H1,), jnp.float32) * 0.05
    # Writable copy (np.asarray of a JAX array can be a read-only view).
    W2 = np.array(jax.random.normal(k_w2, (H2, H1), jnp.float32) * 0.05,
                  dtype=np.float32, copy=True)
    b2 = jax.random.normal(k_b2, (H2,), jnp.float32) * 0.05
    W3 = jax.random.normal(k_w3, (DOUT, H2), jnp.float32) * 0.05
    b3 = jax.random.normal(k_b3, (DOUT,), jnp.float32) * 0.05

    # Impose block sparsity on fc2 weight: drop block (1, 0).
    keep = np.ones((NBR, NBC), bool)
    keep[1, 0] = False
    for r in range(NBR):
        for c in range(NBC):
            if not keep[r, c]:
                W2[r * BS:(r + 1) * BS, c * BS:(c + 1) * BS] = 0.0

    crow, col, vals = to_bsr(W2, BS)
    vals_t = jnp.asarray(np.transpose(vals, (0, 2, 1)))   # per-block W.T

    # fc3 padded to OUT_PAD lanes (zero columns are exact; sliced off later).
    W3t_pad = np.zeros((H2, OUT_PAD), np.float32)
    W3t_pad[:, :DOUT] = np.array(W3).T
    b3_pad = np.zeros((1, OUT_PAD), np.float32)
    b3_pad[0, :DOUT] = np.array(b3)

    params = (
        vals_t,
        jnp.asarray(W1).T,              # (D0, H1)
        jnp.asarray(b1).reshape(1, H1),
        jnp.asarray(b2).reshape(1, H2),
        jnp.asarray(W3t_pad),           # (H2, OUT_PAD)
        jnp.asarray(b3_pad),            # (1, OUT_PAD)
    )

    out = jax.block_until_ready(blocked_mlp_forward(x, params, crow, col))

    # Pure-JAX reference of the PyTorch forward (dense fc2 with zeroed blocks).
    xf = x.reshape(B, -1)
    h1_ref = jnp.maximum(xf @ jnp.asarray(W1).T + b1, 0.0)
    h2_ref = jnp.maximum(h1_ref @ jnp.asarray(W2).T + b2, 0.0)
    ref = h2_ref @ jnp.asarray(W3).T + b3

    assert out.shape == (B, DOUT)
    np.testing.assert_allclose(np.asarray(out), np.asarray(ref),
                               rtol=1e-5, atol=1e-5)
    print("KERNEL_OK")
</pallas_src>

<mosaic_0001>
module attributes {stable_mosaic.version = 11 : i64} {
  func.func @_blocked_mlp_kernel(%arg0: memref<8x256xf32, #tpu.memory_space<vmem>>, %arg1: memref<256x256xf32, #tpu.memory_space<vmem>>, %arg2: memref<1x256xf32, #tpu.memory_space<vmem>>, %arg3: memref<3x128x128xf32, #tpu.memory_space<vmem>>, %arg4: memref<1x256xf32, #tpu.memory_space<vmem>>, %arg5: memref<256x128xf32, #tpu.memory_space<vmem>>, %arg6: memref<1x128xf32, #tpu.memory_space<vmem>>, %arg7: memref<8x128xf32, #tpu.memory_space<vmem>>) attributes {dimension_semantics = [], scalar_prefetch = 0 : i64, scratch_operands = 0 : i64, tpu.core_type = #tpu.core_type<tc>} {
    %c0 = arith.constant 0 : index
    %c0_0 = arith.constant 0 : index
    %0 = vector.load %arg0[%c0, %c0_0] : memref<8x256xf32, #tpu.memory_space<vmem>>, vector<8x256xf32>
    %c0_1 = arith.constant 0 : index
    %c0_2 = arith.constant 0 : index
    %1 = vector.load %arg1[%c0_1, %c0_2] : memref<256x256xf32, #tpu.memory_space<vmem>>, vector<256x256xf32>
    %cst = arith.constant dense<0.000000e+00> : vector<8x256xf32>
    %2 = tpu.matmul %0, %1, %cst {dimension_numbers = #tpu.dot_dimension_numbers<[1], [0], [0], [1], [0, 0, 1, 1], [], []>} : vector<8x256xf32>, vector<256x256xf32>, vector<8x256xf32> -> vector<8x256xf32>
    %c0_3 = arith.constant 0 : index
    %c0_4 = arith.constant 0 : index
    %3 = vector.load %arg2[%c0_3, %c0_4] : memref<1x256xf32, #tpu.memory_space<vmem>>, vector<1x256xf32>
    %4 = vector.broadcast %3 : vector<1x256xf32> to vector<8x256xf32>
    %5 = arith.addf %2, %4 : vector<8x256xf32>
    %cst_5 = arith.constant 0.000000e+00 : f32
    %6 = vector.broadcast %cst_5 : f32 to vector<8x256xf32>
    %7 = arith.maximumf %5, %6 : vector<8x256xf32>
    %c0_6 = arith.constant 0 : index
    %c0_7 = arith.constant 0 : index
    %8 = vector.load %arg4[%c0_6, %c0_7] : memref<1x256xf32, #tpu.memory_space<vmem>>, vector<1x128xf32>
    %9 = vector.extract_strided_slice %7 {offsets = [0, 0], sizes = [8, 128], strides = [1, 1]} : vector<8x256xf32> to vector<8x128xf32>
    %c0_8 = arith.constant 0 : index
    %c0_9 = arith.constant 0 : index
    %c0_10 = arith.constant 0 : index
    %10 = vector.load %arg3[%c0_8, %c0_9, %c0_10] : memref<3x128x128xf32, #tpu.memory_space<vmem>>, vector<1x128x128xf32>
    %11 = vector.shape_cast %10 : vector<1x128x128xf32> to vector<128x128xf32>
    %cst_11 = arith.constant dense<0.000000e+00> : vector<8x128xf32>
    %12 = tpu.matmul %9, %11, %cst_11 {dimension_numbers = #tpu.dot_dimension_numbers<[1], [0], [0], [1], [0, 0, 1, 1], [], []>} : vector<8x128xf32>, vector<128x128xf32>, vector<8x128xf32> -> vector<8x128xf32>
    %13 = vector.extract_strided_slice %7 {offsets = [0, 128], sizes = [8, 128], strides = [1, 1]} : vector<8x256xf32> to vector<8x128xf32>
    %c1 = arith.constant 1 : index
    %c0_12 = arith.constant 0 : index
    %c0_13 = arith.constant 0 : index
    %14 = vector.load %arg3[%c1, %c0_12, %c0_13] : memref<3x128x128xf32, #tpu.memory_space<vmem>>, vector<1x128x128xf32>
    %15 = vector.shape_cast %14 : vector<1x128x128xf32> to vector<128x128xf32>
    %cst_14 = arith.constant dense<0.000000e+00> : vector<8x128xf32>
    %16 = tpu.matmul %13, %15, %cst_14 {dimension_numbers = #tpu.dot_dimension_numbers<[1], [0], [0], [1], [0, 0, 1, 1], [], []>} : vector<8x128xf32>, vector<128x128xf32>, vector<8x128xf32> -> vector<8x128xf32>
    %17 = vector.broadcast %8 : vector<1x128xf32> to vector<8x128xf32>
    %18 = arith.addf %12, %17 : vector<8x128xf32>
    %19 = arith.addf %18, %16 : vector<8x128xf32>
    %cst_15 = arith.constant 0.000000e+00 : f32
    %20 = vector.broadcast %cst_15 : f32 to vector<8x128xf32>
    %21 = arith.maximumf %19, %20 : vector<8x128xf32>
    %c0_16 = arith.constant 0 : index
    %c128 = arith.constant 128 : index
    %22 = vector.load %arg4[%c0_16, %c128] : memref<1x256xf32, #tpu.memory_space<vmem>>, vector<1x128xf32>
    %23 = vector.extract_strided_slice %7 {offsets = [0, 128], sizes = [8, 128], strides = [1, 1]} : vector<8x256xf32> to vector<8x128xf32>
    %c2 = arith.constant 2 : index
    %c0_17 = arith.constant 0 : index
    %c0_18 = arith.constant 0 : index
    %24 = vector.load %arg3[%c2, %c0_17, %c0_18] : memref<3x128x128xf32, #tpu.memory_space<vmem>>, vector<1x128x128xf32>
    %25 = vector.shape_cast %24 : vector<1x128x128xf32> to vector<128x128xf32>
    %cst_19 = arith.constant dense<0.000000e+00> : vector<8x128xf32>
    %26 = tpu.matmul %23, %25, %cst_19 {dimension_numbers = #tpu.dot_dimension_numbers<[1], [0], [0], [1], [0, 0, 1, 1], [], []>} : vector<8x128xf32>, vector<128x128xf32>, vector<8x128xf32> -> vector<8x128xf32>
    %27 = vector.broadcast %22 : vector<1x128xf32> to vector<8x128xf32>
    %28 = arith.addf %26, %27 : vector<8x128xf32>
    %cst_20 = arith.constant 0.000000e+00 : f32
    %29 = vector.broadcast %cst_20 : f32 to vector<8x128xf32>
    %30 = arith.maximumf %28, %29 : vector<8x128xf32>
    %31 = tpu.concatenate %21, %30 in 1 : vector<8x128xf32>, vector<8x128xf32> -> vector<8x256xf32>
    %c0_21 = arith.constant 0 : index
    %c0_22 = arith.constant 0 : index
    %32 = vector.load %arg5[%c0_21, %c0_22] : memref<256x128xf32, #tpu.memory_space<vmem>>, vector<256x128xf32>
    %cst_23 = arith.constant dense<0.000000e+00> : vector<8x128xf32>
    %33 = tpu.matmul %31, %32, %cst_23 {dimension_numbers = #tpu.dot_dimension_numbers<[1], [0], [0], [1], [0, 0, 1, 1], [], []>} : vector<8x256xf32>, vector<256x128xf32>, vector<8x128xf32> -> vector<8x128xf32>
    %c0_24 = arith.constant 0 : index
    %c0_25 = arith.constant 0 : index
    %34 = vector.load %arg6[%c0_24, %c0_25] : memref<1x128xf32, #tpu.memory_space<vmem>>, vector<1x128xf32>
    %35 = vector.broadcast %34 : vector<1x128xf32> to vector<8x128xf32>
    %36 = arith.addf %33, %35 : vector<8x128xf32>
    %c0_26 = arith.constant 0 : index
    %c0_27 = arith.constant 0 : index
    %37 = vector.load %arg7[%c0_26, %c0_27] : memref<8x128xf32, #tpu.memory_space<vmem>>, vector<8x128xf32>
    tpu.vector_store %arg7[%c0_26, %c0_27], %36 {strides = array<i32>} : memref<8x128xf32, #tpu.memory_space<vmem>>, vector<8x128xf32>,
    return
  }
}

</mosaic_0001>

<llo_original>
// kernel: tpu_custom_call.1
$region0: #{tpu_custom_call.1}
  #allocation0 [shape = 'u32[]', space=smem, size = 0x4, offset = 0x4, fixed_abs, tag = 'smem constant byte address 0x4 - core index']
  #allocation1 [shape = 'u32[144,128]{1,0:T(1,128)}', space=vmem, size = 0x12000, scoped, tag = 'internal scratch']
  %s0 = inlined_call_operand.hbm [shape: f32[8,256], index: 0, kind: input, shape index: {}]
  %s1 = inlined_call_operand.hbm [shape: f32[256,256], index: 1, kind: input, shape index: {}]
  %s2 = inlined_call_operand.vmem [shape: f32[1,256], index: 2, kind: input, shape index: {}]
  %s3 = inlined_call_operand.hbm [shape: f32[3,128,128], index: 3, kind: input, shape index: {}]
  %s4 = inlined_call_operand.vmem [shape: f32[1,256], index: 4, kind: input, shape index: {}]
  %s5 = inlined_call_operand.hbm [shape: f32[256,128], index: 5, kind: input, shape index: {}]
  %s6 = inlined_call_operand.vmem [shape: f32[1,128], index: 6, kind: input, shape index: {}]
  %s7 = inlined_call_operand.hbm [shape: f32[8,128], index: 7, kind: output, shape index: {}]
  %s8 = sld [smem:[#allocation0]]
  $region54: #{tpu_custom_call.1} parent=0
    _
  %s10 = ssub.s32 1, %s8
  %s11 = scalar_select 0, %s10, %s8
  $region1: #{tpu_custom_call.1} parent=0
    #allocation2 [shape = 'u8[8192]{0}', space=vmem, size = 0x2000, scoped, tag = 'input window, operand 0, single buffered']
    #allocation3 [shape = 's32[1]{0}', space=sflag, size = 0x4, scoped, tag = 'scoped memory for tpu_custom_call.1']
    #allocation4 [shape = 's32[1]{0}', space=sflag, size = 0x4, scoped, tag = 'scoped memory for tpu_custom_call.1']
    #allocation5 [shape = 'u8[262144]{0}', space=vmem, size = 0x40000, scoped, tag = 'input window, operand 1, single buffered']
    #allocation6 [shape = 's32[1]{0}', space=sflag, size = 0x4, scoped, tag = 'scoped memory for tpu_custom_call.1']
    #allocation7 [shape = 'u8[196608]{0}', space=vmem, size = 0x30000, scoped, tag = 'input window, operand 3, single buffered']
    #allocation8 [shape = 'u8[131072]{0}', space=vmem, size = 0x20000, scoped, tag = 'input window, operand 5, single buffered']
    #allocation9 [shape = 's32[1]{0}', space=sflag, size = 0x4, scoped, tag = 'scoped memory for tpu_custom_call.1']
    #allocation10 [shape = 'u8[4096]{0}', space=vmem, size = 0x1000, scoped, tag = 'output window, operand 0, single buffered']
    %12 = vsyncpa [#allocation3], 0
    %13 = vsyncpa [#allocation6], 0
    %14 = vsyncpa [#allocation9], 0
    %15 = vsyncpa [#allocation4], 0
    // Predicated region
    $region2: #{tpu_custom_call.1} parent=1 // pred_check
      _
    $region3: #{tpu_custom_call.1} parent=1 // pred_check_branch
      %17 = sbr.rel (0) target = $region5
    $region4: #{tpu_custom_call.1} parent=1 // pred_region
      %s19 = ssub.s32 256, 256
      %20 = vsyncadd [#allocation3], %s19
      %s22 = sshll.u32 [#allocation2], 4
      %s23 = int_to_ptr.vmem [resolvable:$true] %s22
      %25 = dma.hbm_to_vmem [thread:$0]  %s0, 256, %s23, [#allocation3]
    $region5: #{tpu_custom_call.1} parent=1 // pred_fallthru
      _
    // Predicated region
    $region6: #{tpu_custom_call.1} parent=1 // pred_check
      _
    $region7: #{tpu_custom_call.1} parent=1 // pred_check_branch
      %27 = sbr.rel (0) target = $region9
    $region8: #{tpu_custom_call.1} parent=1 // pred_region
      %s29 = ssub.s32 8192, 8192
      %30 = vsyncadd [#allocation6], %s29
      %s31 = sshll.u32 [#allocation5], 4
      %s32 = int_to_ptr.vmem [resolvable:$true] %s31
      %37 = dma.hbm_to_vmem [thread:$0]  %s1, 8192, %s32, [#allocation6], 256, 256, 16
    $region9: #{tpu_custom_call.1} parent=1 // pred_fallthru
      _
    // Predicated region
    $region10: #{tpu_custom_call.1} parent=1 // pred_check
      _
    $region11: #{tpu_custom_call.1} parent=1 // pred_check_branch
      %39 = sbr.rel (0) target = $region13
    $region12: #{tpu_custom_call.1} parent=1 // pred_region
      _
    $region13: #{tpu_custom_call.1} parent=1 // pred_fallthru
      _
    // Predicated region
    $region14: #{tpu_custom_call.1} parent=1 // pred_check
      _
    $region15: #{tpu_custom_call.1} parent=1 // pred_check_branch
      %41 = sbr.rel (0) target = $region17
    $region16: #{tpu_custom_call.1} parent=1 // pred_region
      %s43 = ssub.s32 6144, 6144
      %44 = vsyncadd [#allocation6], %s43
      %s45 = sshll.u32 [#allocation7], 4
      %s46 = int_to_ptr.vmem [resolvable:$true] %s45
      %51 = dma.hbm_to_vmem [thread:$0]  %s3, 6144, %s46, [#allocation6], 128, 128, 8
    $region17: #{tpu_custom_call.1} parent=1 // pred_fallthru
      _
    // Predicated region
    $region18: #{tpu_custom_call.1} parent=1 // pred_check
      _
    $region19: #{tpu_custom_call.1} parent=1 // pred_check_branch
      %53 = sbr.rel (0) target = $region21
    $region20: #{tpu_custom_call.1} parent=1 // pred_region
      _
    $region21: #{tpu_custom_call.1} parent=1 // pred_fallthru
      _
    // Predicated region
    $region22: #{tpu_custom_call.1} parent=1 // pred_check
      _
    $region23: #{tpu_custom_call.1} parent=1 // pred_check_branch
      %55 = sbr.rel (0) target = $region25
    $region24: #{tpu_custom_call.1} parent=1 // pred_region
      %s57 = ssub.s32 4096, 4096
      %58 = vsyncadd [#allocation9], %s57
      %s59 = sshll.u32 [#allocation8], 4
      %s60 = int_to_ptr.vmem [resolvable:$true] %s59
      %65 = dma.hbm_to_vmem [thread:$0]  %s5, 4096, %s60, [#allocation9], 128, 128, 8
    $region25: #{tpu_custom_call.1} parent=1 // pred_fallthru
      _
    // Predicated region
    $region26: #{tpu_custom_call.1} parent=1 // pred_check
      _
    $region27: #{tpu_custom_call.1} parent=1 // pred_check_branch
      %67 = sbr.rel (0) target = $region29
    $region28: #{tpu_custom_call.1} parent=1 // pred_region
      _
    $region29: #{tpu_custom_call.1} parent=1 // pred_fallthru
      _
    // Predicated region
    $region30: #{tpu_custom_call.1} parent=1 // pred_check
      _
    $region31: #{tpu_custom_call.1} parent=1 // pred_check_branch
      %69 = sbr.rel (0) target = $region33
    $region32: #{tpu_custom_call.1} parent=1 // pred_region
      %70 = dma.done [#allocation3], 256
    $region33: #{tpu_custom_call.1} parent=1 // pred_fallthru
      _
    // Predicated region
    $region34: #{tpu_custom_call.1} parent=1 // pred_check
      _
    $region35: #{tpu_custom_call.1} parent=1 // pred_check_branch
      %72 = sbr.rel (0) target = $region37
    $region36: #{tpu_custom_call.1} parent=1 // pred_region
      %73 = dma.done [#allocation6], 8192
    $region37: #{tpu_custom_call.1} parent=1 // pred_fallthru
      _
    // Predicated region
    $region38: #{tpu_custom_call.1} parent=1 // pred_check
      _
    $region39: #{tpu_custom_call.1} parent=1 // pred_check_branch
      %75 = sbr.rel (0) target = $region41
    $region40: #{tpu_custom_call.1} parent=1 // pred_region
      %76 = dma.done [#allocation6], 6144
    $region41: #{tpu_custom_call.1} parent=1 // pred_fallthru
      _
    // Predicated region
    $region42: #{tpu_custom_call.1} parent=1 // pred_check
      _
    $region43: #{tpu_custom_call.1} parent=1 // pred_check_branch
      %78 = sbr.rel (0) target = $region45
    $region44: #{tpu_custom_call.1} parent=1 // pred_region
      %79 = dma.done [#allocation9], 4096
    $region45: #{tpu_custom_call.1} parent=1 // pred_fallthru
      _
    %v80 = vld [vmem:[#allocation2] sm:$0xff]
    %v81 = vld [vmem:[#allocation2 + $0x8] sm:$0xff]
    %v82 = vld [vmem:[#allocation5] sm:$0xff]
    %v83 = vld [vmem:[#allocation5 + $0x8] sm:$0xff]
    %v84 = vld [vmem:[#allocation5 + $0x10] sm:$0xff]
    %v85 = vld [vmem:[#allocation5 + $0x18] sm:$0xff]
    %v86 = vld [vmem:[#allocation5 + $0x20] sm:$0xff]
    %v87 = vld [vmem:[#allocation5 + $0x28] sm:$0xff]
    %v88 = vld [vmem:[#allocation5 + $0x30] sm:$0xff]
    %v89 = vld [vmem:[#allocation5 + $0x38] sm:$0xff]
    %v90 = vld [vmem:[#allocation5 + $0x40] sm:$0xff]
    %v91 = vld [vmem:[#allocation5 + $0x48] sm:$0xff]
    %v92 = vld [vmem:[#allocation5 + $0x50] sm:$0xff]
    %v93 = vld [vmem:[#allocation5 + $0x58] sm:$0xff]
    %v94 = vld [vmem:[#allocation5 + $0x60] sm:$0xff]
    %v95 = vld [vmem:[#allocation5 + $0x68] sm:$0xff]
    %v96 = vld [vmem:[#allocation5 + $0x70] sm:$0xff]
    %v97 = vld [vmem:[#allocation5 + $0x78] sm:$0xff]
    %v98 = vld [vmem:[#allocation5 + $0x80] sm:$0xff]
    %v99 = vld [vmem:[#allocation5 + $0x88] sm:$0xff]
    %v100 = vld [vmem:[#allocation5 + $0x90] sm:$0xff]
    %v101 = vld [vmem:[#allocation5 + $0x98] sm:$0xff]
    %v102 = vld [vmem:[#allocation5 + $0xa0] sm:$0xff]
    %v103 = vld [vmem:[#allocation5 + $0xa8] sm:$0xff]
    %v104 = vld [vmem:[#allocation5 + $0xb0] sm:$0xff]
    %v105 = vld [vmem:[#allocation5 + $0xb8] sm:$0xff]
    %v106 = vld [vmem:[#allocation5 + $0xc0] sm:$0xff]
    %v107 = vld [vmem:[#allocation5 + $0xc8] sm:$0xff]
    %v108 = vld [vmem:[#allocation5 + $0xd0] sm:$0xff]
    %v109 = vld [vmem:[#allocation5 + $0xd8] sm:$0xff]
    %v110 = vld [vmem:[#allocation5 + $0xe0] sm:$0xff]
    %v111 = vld [vmem:[#allocation5 + $0xe8] sm:$0xff]
    %v112 = vld [vmem:[#allocation5 + $0xf0] sm:$0xff]
    %v113 = vld [vmem:[#allocation5 + $0xf8] sm:$0xff]
    %v114 = vld [vmem:[#allocation5 + $0x100] sm:$0xff]
    %v115 = vld [vmem:[#allocation5 + $0x108] sm:$0xff]
    %v116 = vld [vmem:[#allocation5 + $0x110] sm:$0xff]
    %v117 = vld [vmem:[#allocation5 + $0x118] sm:$0xff]
    %v118 = vld [vmem:[#allocation5 + $0x120] sm:$0xff]
    %v119 = vld [vmem:[#allocation5 + $0x128] sm:$0xff]
    %v120 = vld [vmem:[#allocation5 + $0x130] sm:$0xff]
    %v121 = vld [vmem:[#allocation5 + $0x138] sm:$0xff]
    %v122 = vld [vmem:[#allocation5 + $0x140] sm:$0xff]
    %v123 = vld [vmem:[#allocation5 + $0x148] sm:$0xff]
    %v124 = vld [vmem:[#allocation5 + $0x150] sm:$0xff]
    %v125 = vld [vmem:[#allocation5 + $0x158] sm:$0xff]
    %v126 = vld [vmem:[#allocation5 + $0x160] sm:$0xff]
    %v127 = vld [vmem:[#allocation5 + $0x168] sm:$0xff]
    %v128 = vld [vmem:[#allocation5 + $0x170] sm:$0xff]
    %v129 = vld [vmem:[#allocation5 + $0x178] sm:$0xff]
    %v130 = vld [vmem:[#allocation5 + $0x180] sm:$0xff]
    %v131 = vld [vmem:[#allocation5 + $0x188] sm:$0xff]
    %v132 = vld [vmem:[#allocation5 + $0x190] sm:$0xff]
    %v133 = vld [vmem:[#allocation5 + $0x198] sm:$0xff]
    %v134 = vld [vmem:[#allocation5 + $0x1a0] sm:$0xff]
    %v135 = vld [vmem:[#allocation5 + $0x1a8] sm:$0xff]
    %v136 = vld [vmem:[#allocation5 + $0x1b0] sm:$0xff]
    %v137 = vld [vmem:[#allocation5 + $0x1b8] sm:$0xff]
    %v138 = vld [vmem:[#allocation5 + $0x1c0] sm:$0xff]
    %v139 = vld [vmem:[#allocation5 + $0x1c8] sm:$0xff]
    %v140 = vld [vmem:[#allocation5 + $0x1d0] sm:$0xff]
    %v141 = vld [vmem:[#allocation5 + $0x1d8] sm:$0xff]
    %v142 = vld [vmem:[#allocation5 + $0x1e0] sm:$0xff]
    %v143 = vld [vmem:[#allocation5 + $0x1e8] sm:$0xff]
    %v144 = vld [vmem:[#allocation5 + $0x1f0] sm:$0xff]
    %v145 = vld [vmem:[#allocation5 + $0x1f8] sm:$0xff]
    %v146 = vld [vmem:[%s2] sm:$0x3]
    %v148 = vlaneseq
    %v149 = vshrl.u32 %v148, 7
    %v150 = vsub.s32 0, %v149
    %v151 = vrot.slane %v146, %v150
    %v152 = vlaneseq
    %v153 = vshrl.u32 %v152, 7
    %v154 = vsub.s32 1, %v153
    %v155 = vrot.slane %v146, %v154
    %158 = vmatprep.subr.mxu0 %v113
    %159 = vmatpush1.msra.mxu0 %v112
    %160 = vmatprep.subr.mxu0 %v111
    %161 = vmatpush1.msra.mxu0 %v110
    %162 = vmatprep.subr.mxu0 %v109
    %163 = vmatpush1.msra.mxu0 %v108
    %164 = vmatprep.subr.mxu0 %v107
    %165 = vmatpush1.msra.mxu0 %v106
    %166 = vmatprep.subr.mxu0 %v105
    %167 = vmatpush1.msra.mxu0 %v104
    %168 = vmatprep.subr.mxu0 %v103
    %169 = vmatpush1.msra.mxu0 %v102
    %170 = vmatprep.subr.mxu0 %v101
    %171 = vmatpush1.msra.mxu0 %v100
    %172 = vmatprep.subr.mxu0 %v99
    %173 = vmatpush1.msra.mxu0 %v98
    %174 = vmatprep.subr.mxu0 %v97
    %175 = vmatpush1.msra.mxu0 %v96
    %176 = vmatprep.subr.mxu0 %v95
    %177 = vmatpush1.msra.mxu0 %v94
    %178 = vmatprep.subr.mxu0 %v93
    %179 = vmatpush1.msra.mxu0 %v92
    %180 = vmatprep.subr.mxu0 %v91
    %181 = vmatpush1.msra.mxu0 %v90
    %182 = vmatprep.subr.mxu0 %v89
    %183 = vmatpush1.msra.mxu0 %v88
    %184 = vmatprep.subr.mxu0 %v87
    %185 = vmatpush1.msra.mxu0 %v86
    %186 = vmatprep.subr.mxu0 %v85
    %187 = vmatpush1.msra.mxu0 %v84
    %188 = vmatprep.subr.mxu0 %v83
    %189 = vmatpush1.msra.mxu0 %v82
    %190 = vmatprep.subr.mxu0 %v145
    %191 = vmatpush2.msra.mxu0 %v144
    %192 = vmatprep.subr.mxu0 %v143
    %193 = vmatpush2.msra.mxu0 %v142
    %194 = vmatprep.subr.mxu0 %v141
    %195 = vmatpush2.msra.mxu0 %v140
    %196 = vmatprep.subr.mxu0 %v139
    %197 = vmatpush2.msra.mxu0 %v138
    %198 = vmatprep.subr.mxu0 %v137
    %199 = vmatpush2.msra.mxu0 %v136
    %200 = vmatprep.subr.mxu0 %v135
    %201 = vmatpush2.msra.mxu0 %v134
    %202 = vmatprep.subr.mxu0 %v133
    %203 = vmatpush2.msra.mxu0 %v132
    %204 = vmatprep.subr.mxu0 %v131
    %205 = vmatpush2.msra.mxu0 %v130
    %206 = vmatprep.subr.mxu0 %v129
    %207 = vmatpush2.msra.mxu0 %v128
    %208 = vmatprep.subr.mxu0 %v127
    %209 = vmatpush2.msra.mxu0 %v126
    %210 = vmatprep.subr.mxu0 %v125
    %211 = vmatpush2.msra.mxu0 %v124
    %212 = vmatprep.subr.mxu0 %v123
    %213 = vmatpush2.msra.mxu0 %v122
    %214 = vmatprep.subr.mxu0 %v121
    %215 = vmatpush2.msra.mxu0 %v120
    %216 = vmatprep.subr.mxu0 %v119
    %217 = vmatpush2.msra.mxu0 %v118
    %218 = vmatprep.subr.mxu0 %v117
    %219 = vmatpush2.msra.mxu0 %v116
    %220 = vmatprep.subr.mxu0 %v115
    %221 = vmatpush2.msra.mxu0 %v114
    %222 = vmatprep.mubr.f32.mxu0 %v81
    %223 = vmatmul.mubr.f32.gmra.mxu0 %v80
    %v224 = vpop.f32.mrf.mxu0
    %v225 = vadd.f32 %v151, %v224
    %v226 = vpop.f32.mrf.mxu0
    %v227 = vadd.f32 %v155, %v226
    %228 = vdwg.mxu0
    %v229 = vmax.f32 %v225, 0.0
    %v230 = vmax.f32 %v227, 0.0
    %v231 = vld [vmem:[%s4] sm:$0x1]
    %v232 = vld [vmem:[#allocation7] sm:$0xff]
    %v233 = vld [vmem:[#allocation7 + $0x8] sm:$0xff]
    %v234 = vld [vmem:[#allocation7 + $0x10] sm:$0xff]
    %v235 = vld [vmem:[#allocation7 + $0x18] sm:$0xff]
    %v236 = vld [vmem:[#allocation7 + $0x20] sm:$0xff]
    %v237 = vld [vmem:[#allocation7 + $0x28] sm:$0xff]
    %v238 = vld [vmem:[#allocation7 + $0x30] sm:$0xff]
    %v239 = vld [vmem:[#allocation7 + $0x38] sm:$0xff]
    %v240 = vld [vmem:[#allocation7 + $0x40] sm:$0xff]
    %v241 = vld [vmem:[#allocation7 + $0x48] sm:$0xff]
    %v242 = vld [vmem:[#allocation7 + $0x50] sm:$0xff]
    %v243 = vld [vmem:[#allocation7 + $0x58] sm:$0xff]
    %v244 = vld [vmem:[#allocation7 + $0x60] sm:$0xff]
    %v245 = vld [vmem:[#allocation7 + $0x68] sm:$0xff]
    %v246 = vld [vmem:[#allocation7 + $0x70] sm:$0xff]
    %v247 = vld [vmem:[#allocation7 + $0x78] sm:$0xff]
    %s248 = scalar_lea.vmem [#allocation7], 128
    %v249 = vld [vmem:[%s248] sm:$0xff]
    %v250 = vld [vmem:[%s248 + $0x8] sm:$0xff]
    %v251 = vld [vmem:[%s248 + $0x10] sm:$0xff]
    %v252 = vld [vmem:[%s248 + $0x18] sm:$0xff]
    %v253 = vld [vmem:[%s248 + $0x20] sm:$0xff]
    %v254 = vld [vmem:[%s248 + $0x28] sm:$0xff]
    %v255 = vld [vmem:[%s248 + $0x30] sm:$0xff]
    %v256 = vld [vmem:[%s248 + $0x38] sm:$0xff]
    %v257 = vld [vmem:[%s248 + $0x40] sm:$0xff]
    %v258 = vld [vmem:[%s248 + $0x48] sm:$0xff]
    %v259 = vld [vmem:[%s248 + $0x50] sm:$0xff]
    %v260 = vld [vmem:[%s248 + $0x58] sm:$0xff]
    %v261 = vld [vmem:[%s248 + $0x60] sm:$0xff]
    %v262 = vld [vmem:[%s248 + $0x68] sm:$0xff]
    %v263 = vld [vmem:[%s248 + $0x70] sm:$0xff]
    %v264 = vld [vmem:[%s248 + $0x78] sm:$0xff]
    %265 = vmatprep.subr.mxu0 0.0
    %266 = vmatpush1.msra.mxu0 %v264
    %267 = vmatprep.subr.mxu0 0.0
    %268 = vmatpush1.msra.mxu0 %v263
    %269 = vmatprep.subr.mxu0 0.0
    %270 = vmatpush1.msra.mxu0 %v262
    %271 = vmatprep.subr.mxu0 0.0
    %272 = vmatpush1.msra.mxu0 %v261
    %273 = vmatprep.subr.mxu0 0.0
    %274 = vmatpush1.msra.mxu0 %v260
    %275 = vmatprep.subr.mxu0 0.0
    %276 = vmatpush1.msra.mxu0 %v259
    %277 = vmatprep.subr.mxu0 0.0
    %278 = vmatpush1.msra.mxu0 %v258
    %279 = vmatprep.subr.mxu0 0.0
    %280 = vmatpush1.msra.mxu0 %v257
    %281 = vmatprep.subr.mxu0 0.0
    %282 = vmatpush1.msra.mxu0 %v256
    %283 = vmatprep.subr.mxu0 0.0
    %284 = vmatpush1.msra.mxu0 %v255
    %285 = vmatprep.subr.mxu0 0.0
    %286 = vmatpush1.msra.mxu0 %v254
    %287 = vmatprep.subr.mxu0 0.0
    %288 = vmatpush1.msra.mxu0 %v253
    %289 = vmatprep.subr.mxu0 0.0
    %290 = vmatpush1.msra.mxu0 %v252
    %291 = vmatprep.subr.mxu0 0.0
    %292 = vmatpush1.msra.mxu0 %v251
    %293 = vmatprep.subr.mxu0 0.0
    %294 = vmatpush1.msra.mxu0 %v250
    %295 = vmatprep.subr.mxu0 0.0
    %296 = vmatpush1.msra.mxu0 %v249
    %297 = vmatprep.subr.mxu0 0.0
    %298 = vmatpush2.msra.mxu0 0.0
    %299 = vmatprep.subr.mxu0 0.0
    %300 = vmatpush2.msra.mxu0 0.0
    %301 = vmatprep.subr.mxu0 0.0
    %302 = vmatpush2.msra.mxu0 0.0
    %303 = vmatprep.subr.mxu0 0.0
    %304 = vmatpush2.msra.mxu0 0.0
    %305 = vmatprep.subr.mxu0 0.0
    %306 = vmatpush2.msra.mxu0 0.0
    %307 = vmatprep.subr.mxu0 0.0
    %308 = vmatpush2.msra.mxu0 0.0
    %309 = vmatprep.subr.mxu0 0.0
    %310 = vmatpush2.msra.mxu0 0.0
    %311 = vmatprep.subr.mxu0 0.0
    %312 = vmatpush2.msra.mxu0 0.0
    %313 = vmatprep.subr.mxu0 0.0
    %314 = vmatpush2.msra.mxu0 0.0
    %315 = vmatprep.subr.mxu0 0.0
    %316 = vmatpush2.msra.mxu0 0.0
    %317 = vmatprep.subr.mxu0 0.0
    %318 = vmatpush2.msra.mxu0 0.0
    %319 = vmatprep.subr.mxu0 0.0
    %320 = vmatpush2.msra.mxu0 0.0
    %321 = vmatprep.subr.mxu0 0.0
    %322 = vmatpush2.msra.mxu0 0.0
    %323 = vmatprep.subr.mxu0 0.0
    %324 = vmatpush2.msra.mxu0 0.0
    %325 = vmatprep.subr.mxu0 0.0
    %326 = vmatpush2.msra.mxu0 0.0
    %327 = vmatprep.subr.mxu0 0.0
    %328 = vmatpush2.msra.mxu0 0.0
    %329 = vmatprep.mubr.f32.mxu0 0.0
    %330 = vmatmul.mubr.f32.gmra.mxu0 %v230
    %v331 = vpop.f32.mrf.mxu0
    %v332 = vadd.f32 0.0, %v331
    %v333 = vpop.f32.mrf.mxu0
    %334 = vdwg.mxu0
    %v336 = vlaneseq
    %v337 = vshrl.u32 %v336, 7
    %v338 = vsub.s32 0, %v337
    %v339 = vrot.slane %v231, %v338
    %341 = vmatprep.subr.mxu0 0.0
    %342 = vmatpush1.msra.mxu0 %v247
    %343 = vmatprep.subr.mxu0 0.0
    %344 = vmatpush1.msra.mxu0 %v246
    %345 = vmatprep.subr.mxu0 0.0
    %346 = vmatpush1.msra.mxu0 %v245
    %347 = vmatprep.subr.mxu0 0.0
    %348 = vmatpush1.msra.mxu0 %v244
    %349 = vmatprep.subr.mxu0 0.0
    %350 = vmatpush1.msra.mxu0 %v243
    %351 = vmatprep.subr.mxu0 0.0
    %352 = vmatpush1.msra.mxu0 %v242
    %353 = vmatprep.subr.mxu0 0.0
    %354 = vmatpush1.msra.mxu0 %v241
    %355 = vmatprep.subr.mxu0 0.0
    %356 = vmatpush1.msra.mxu0 %v240
    %357 = vmatprep.subr.mxu0 0.0
    %358 = vmatpush1.msra.mxu0 %v239
    %359 = vmatprep.subr.mxu0 0.0
    %360 = vmatpush1.msra.mxu0 %v238
    %361 = vmatprep.subr.mxu0 0.0
    %362 = vmatpush1.msra.mxu0 %v237
    %363 = vmatprep.subr.mxu0 0.0
    %364 = vmatpush1.msra.mxu0 %v236
    %365 = vmatprep.subr.mxu0 0.0
    %366 = vmatpush1.msra.mxu0 %v235
    %367 = vmatprep.subr.mxu0 0.0
    %368 = vmatpush1.msra.mxu0 %v234
    %369 = vmatprep.subr.mxu0 0.0
    %370 = vmatpush1.msra.mxu0 %v233
    %371 = vmatprep.subr.mxu0 0.0
    %372 = vmatpush1.msra.mxu0 %v232
    %373 = vmatprep.subr.mxu0 0.0
    %374 = vmatpush2.msra.mxu0 0.0
    %375 = vmatprep.subr.mxu0 0.0
    %376 = vmatpush2.msra.mxu0 0.0
    %377 = vmatprep.subr.mxu0 0.0
    %378 = vmatpush2.msra.mxu0 0.0
    %379 = vmatprep.subr.mxu0 0.0
    %380 = vmatpush2.msra.mxu0 0.0
    %381 = vmatprep.subr.mxu0 0.0
    %382 = vmatpush2.msra.mxu0 0.0
    %383 = vmatprep.subr.mxu0 0.0
    %384 = vmatpush2.msra.mxu0 0.0
    %385 = vmatprep.subr.mxu0 0.0
    %386 = vmatpush2.msra.mxu0 0.0
    %387 = vmatprep.subr.mxu0 0.0
    %388 = vmatpush2.msra.mxu0 0.0
    %389 = vmatprep.subr.mxu0 0.0
    %390 = vmatpush2.msra.mxu0 0.0
    %391 = vmatprep.subr.mxu0 0.0
    %392 = vmatpush2.msra.mxu0 0.0
    %393 = vmatprep.subr.mxu0 0.0
    %394 = vmatpush2.msra.mxu0 0.0
    %395 = vmatprep.subr.mxu0 0.0
    %396 = vmatpush2.msra.mxu0 0.0
    %397 = vmatprep.subr.mxu0 0.0
    %398 = vmatpush2.msra.mxu0 0.0
    %399 = vmatprep.subr.mxu0 0.0
    %400 = vmatpush2.msra.mxu0 0.0
    %401 = vmatprep.subr.mxu0 0.0
    %402 = vmatpush2.msra.mxu0 0.0
    %403 = vmatprep.subr.mxu0 0.0
    %404 = vmatpush2.msra.mxu0 0.0
    %405 = vmatprep.mubr.f32.mxu0 0.0
    %406 = vmatmul.mubr.f32.gmra.mxu0 %v229
    %v407 = vpop.f32.mrf.mxu0
    %v408 = vadd.f32 %v339, %v407
    %v409 = vpop.f32.mrf.mxu0
    %410 = vdwg.mxu0
    %v411 = vadd.f32 %v408, %v332
    %v412 = vmax.f32 %v411, 0.0
    %v413 = vld [vmem:[%s4 + $0x1] sm:$0x1]
    %s414 = scalar_lea.vmem [#allocation7], 256
    %v415 = vld [vmem:[%s414] sm:$0xff]
    %v416 = vld [vmem:[%s414 + $0x8] sm:$0xff]
    %v417 = vld [vmem:[%s414 + $0x10] sm:$0xff]
    %v418 = vld [vmem:[%s414 + $0x18] sm:$0xff]
    %v419 = vld [vmem:[%s414 + $0x20] sm:$0xff]
    %v420 = vld [vmem:[%s414 + $0x28] sm:$0xff]
    %v421 = vld [vmem:[%s414 + $0x30] sm:$0xff]
    %v422 = vld [vmem:[%s414 + $0x38] sm:$0xff]
    %v423 = vld [vmem:[%s414 + $0x40] sm:$0xff]
    %v424 = vld [vmem:[%s414 + $0x48] sm:$0xff]
    %v425 = vld [vmem:[%s414 + $0x50] sm:$0xff]
    %v426 = vld [vmem:[%s414 + $0x58] sm:$0xff]
    %v427 = vld [vmem:[%s414 + $0x60] sm:$0xff]
    %v428 = vld [vmem:[%s414 + $0x68] sm:$0xff]
    %v429 = vld [vmem:[%s414 + $0x70] sm:$0xff]
    %v430 = vld [vmem:[%s414 + $0x78] sm:$0xff]
    %v432 = vlaneseq
    %v433 = vshrl.u32 %v432, 7
    %v434 = vsub.s32 0, %v433
    %v435 = vrot.slane %v413, %v434
    %437 = vmatprep.subr.mxu0 0.0
    %438 = vmatpush1.msra.mxu0 %v430
    %439 = vmatprep.subr.mxu0 0.0
    %440 = vmatpush1.msra.mxu0 %v429
    %441 = vmatprep.subr.mxu0 0.0
    %442 = vmatpush1.msra.mxu0 %v428
    %443 = vmatprep.subr.mxu0 0.0
    %444 = vmatpush1.msra.mxu0 %v427
    %445 = vmatprep.subr.mxu0 0.0
    %446 = vmatpush1.msra.mxu0 %v426
    %447 = vmatprep.subr.mxu0 0.0
    %448 = vmatpush1.msra.mxu0 %v425
    %449 = vmatprep.subr.mxu0 0.0
    %450 = vmatpush1.msra.mxu0 %v424
    %451 = vmatprep.subr.mxu0 0.0
    %452 = vmatpush1.msra.mxu0 %v423
    %453 = vmatprep.subr.mxu0 0.0
    %454 = vmatpush1.msra.mxu0 %v422
    %455 = vmatprep.subr.mxu0 0.0
    %456 = vmatpush1.msra.mxu0 %v421
    %457 = vmatprep.subr.mxu0 0.0
    %458 = vmatpush1.msra.mxu0 %v420
    %459 = vmatprep.subr.mxu0 0.0
    %460 = vmatpush1.msra.mxu0 %v419
    %461 = vmatprep.subr.mxu0 0.0
    %462 = vmatpush1.msra.mxu0 %v418
    %463 = vmatprep.subr.mxu0 0.0
    %464 = vmatpush1.msra.mxu0 %v417
    %465 = vmatprep.subr.mxu0 0.0
    %466 = vmatpush1.msra.mxu0 %v416
    %467 = vmatprep.subr.mxu0 0.0
    %468 = vmatpush1.msra.mxu0 %v415
    %469 = vmatprep.subr.mxu0 0.0
    %470 = vmatpush2.msra.mxu0 0.0
    %471 = vmatprep.subr.mxu0 0.0
    %472 = vmatpush2.msra.mxu0 0.0
    %473 = vmatprep.subr.mxu0 0.0
    %474 = vmatpush2.msra.mxu0 0.0
    %475 = vmatprep.subr.mxu0 0.0
    %476 = vmatpush2.msra.mxu0 0.0
    %477 = vmatprep.subr.mxu0 0.0
    %478 = vmatpush2.msra.mxu0 0.0
    %479 = vmatprep.subr.mxu0 0.0
    %480 = vmatpush2.msra.mxu0 0.0
    %481 = vmatprep.subr.mxu0 0.0
    %482 = vmatpush2.msra.mxu0 0.0
    %483 = vmatprep.subr.mxu0 0.0
    %484 = vmatpush2.msra.mxu0 0.0
    %485 = vmatprep.subr.mxu0 0.0
    %486 = vmatpush2.msra.mxu0 0.0
    %487 = vmatprep.subr.mxu0 0.0
    %488 = vmatpush2.msra.mxu0 0.0
    %489 = vmatprep.subr.mxu0 0.0
    %490 = vmatpush2.msra.mxu0 0.0
    %491 = vmatprep.subr.mxu0 0.0
    %492 = vmatpush2.msra.mxu0 0.0
    %493 = vmatprep.subr.mxu0 0.0
    %494 = vmatpush2.msra.mxu0 0.0
    %495 = vmatprep.subr.mxu0 0.0
    %496 = vmatpush2.msra.mxu0 0.0
    %497 = vmatprep.subr.mxu0 0.0
    %498 = vmatpush2.msra.mxu0 0.0
    %499 = vmatprep.subr.mxu0 0.0
    %500 = vmatpush2.msra.mxu0 0.0
    %501 = vmatprep.mubr.f32.mxu0 0.0
    %502 = vmatmul.mubr.f32.gmra.mxu0 %v230
    %v503 = vpop.f32.mrf.mxu0
    %v504 = vadd.f32 %v435, %v503
    %v505 = vpop.f32.mrf.mxu0
    %506 = vdwg.mxu0
    %v507 = vmax.f32 %v504, 0.0
    %v508 = vld [vmem:[#allocation8] sm:$0xff]
    %v509 = vld [vmem:[#allocation8 + $0x8] sm:$0xff]
    %v510 = vld [vmem:[#allocation8 + $0x10] sm:$0xff]
    %v511 = vld [vmem:[#allocation8 + $0x18] sm:$0xff]
    %v512 = vld [vmem:[#allocation8 + $0x20] sm:$0xff]
    %v513 = vld [vmem:[#allocation8 + $0x28] sm:$0xff]
    %v514 = vld [vmem:[#allocation8 + $0x30] sm:$0xff]
    %v515 = vld [vmem:[#allocation8 + $0x38] sm:$0xff]
    %v516 = vld [vmem:[#allocation8 + $0x40] sm:$0xff]
    %v517 = vld [vmem:[#allocation8 + $0x48] sm:$0xff]
    %v518 = vld [vmem:[#allocation8 + $0x50] sm:$0xff]
    %v519 = vld [vmem:[#allocation8 + $0x58] sm:$0xff]
    %v520 = vld [vmem:[#allocation8 + $0x60] sm:$0xff]
    %v521 = vld [vmem:[#allocation8 + $0x68] sm:$0xff]
    %v522 = vld [vmem:[#allocation8 + $0x70] sm:$0xff]
    %v523 = vld [vmem:[#allocation8 + $0x78] sm:$0xff]
    %v524 = vld [vmem:[#allocation8 + $0x80] sm:$0xff]
    %v525 = vld [vmem:[#allocation8 + $0x88] sm:$0xff]
    %v526 = vld [vmem:[#allocation8 + $0x90] sm:$0xff]
    %v527 = vld [vmem:[#allocation8 + $0x98] sm:$0xff]
    %v528 = vld [vmem:[#allocation8 + $0xa0] sm:$0xff]
    %v529 = vld [vmem:[#allocation8 + $0xa8] sm:$0xff]
    %v530 = vld [vmem:[#allocation8 + $0xb0] sm:$0xff]
    %v531 = vld [vmem:[#allocation8 + $0xb8] sm:$0xff]
    %v532 = vld [vmem:[#allocation8 + $0xc0] sm:$0xff]
    %v533 = vld [vmem:[#allocation8 + $0xc8] sm:$0xff]
    %v534 = vld [vmem:[#allocation8 + $0xd0] sm:$0xff]
    %v535 = vld [vmem:[#allocation8 + $0xd8] sm:$0xff]
    %v536 = vld [vmem:[#allocation8 + $0xe0] sm:$0xff]
    %v537 = vld [vmem:[#allocation8 + $0xe8] sm:$0xff]
    %v538 = vld [vmem:[#allocation8 + $0xf0] sm:$0xff]
    %v539 = vld [vmem:[#allocation8 + $0xf8] sm:$0xff]
    %v540 = vld [vmem:[%s6] sm:$0x1]
    %v542 = vlaneseq
    %v543 = vshrl.u32 %v542, 7
    %v544 = vsub.s32 0, %v543
    %v545 = vrot.slane %v540, %v544
    %547 = vmatprep.subr.mxu0 0.0
    %548 = vmatpush1.msra.mxu0 %v523
    %549 = vmatprep.subr.mxu0 0.0
    %550 = vmatpush1.msra.mxu0 %v522
    %551 = vmatprep.subr.mxu0 0.0
    %552 = vmatpush1.msra.mxu0 %v521
    %553 = vmatprep.subr.mxu0 0.0
    %554 = vmatpush1.msra.mxu0 %v520
    %555 = vmatprep.subr.mxu0 0.0
    %556 = vmatpush1.msra.mxu0 %v519
    %557 = vmatprep.subr.mxu0 0.0
    %558 = vmatpush1.msra.mxu0 %v518
    %559 = vmatprep.subr.mxu0 0.0
    %560 = vmatpush1.msra.mxu0 %v517
    %561 = vmatprep.subr.mxu0 0.0
    %562 = vmatpush1.msra.mxu0 %v516
    %563 = vmatprep.subr.mxu0 0.0
    %564 = vmatpush1.msra.mxu0 %v515
    %565 = vmatprep.subr.mxu0 0.0
    %566 = vmatpush1.msra.mxu0 %v514
    %567 = vmatprep.subr.mxu0 0.0
    %568 = vmatpush1.msra.mxu0 %v513
    %569 = vmatprep.subr.mxu0 0.0
    %570 = vmatpush1.msra.mxu0 %v512
    %571 = vmatprep.subr.mxu0 0.0
    %572 = vmatpush1.msra.mxu0 %v511
    %573 = vmatprep.subr.mxu0 0.0
    %574 = vmatpush1.msra.mxu0 %v510
    %575 = vmatprep.subr.mxu0 0.0
    %576 = vmatpush1.msra.mxu0 %v509
    %577 = vmatprep.subr.mxu0 0.0
    %578 = vmatpush1.msra.mxu0 %v508
    %579 = vmatprep.subr.mxu0 0.0
    %580 = vmatpush2.msra.mxu0 %v539
    %581 = vmatprep.subr.mxu0 0.0
    %582 = vmatpush2.msra.mxu0 %v538
    %583 = vmatprep.subr.mxu0 0.0
    %584 = vmatpush2.msra.mxu0 %v537
    %585 = vmatprep.subr.mxu0 0.0
    %586 = vmatpush2.msra.mxu0 %v536
    %587 = vmatprep.subr.mxu0 0.0
    %588 = vmatpush2.msra.mxu0 %v535
    %589 = vmatprep.subr.mxu0 0.0
    %590 = vmatpush2.msra.mxu0 %v534
    %591 = vmatprep.subr.mxu0 0.0
    %592 = vmatpush2.msra.mxu0 %v533
    %593 = vmatprep.subr.mxu0 0.0
    %594 = vmatpush2.msra.mxu0 %v532
    %595 = vmatprep.subr.mxu0 0.0
    %596 = vmatpush2.msra.mxu0 %v531
    %597 = vmatprep.subr.mxu0 0.0
    %598 = vmatpush2.msra.mxu0 %v530
    %599 = vmatprep.subr.mxu0 0.0
    %600 = vmatpush2.msra.mxu0 %v529
    %601 = vmatprep.subr.mxu0 0.0
    %602 = vmatpush2.msra.mxu0 %v528
    %603 = vmatprep.subr.mxu0 0.0
    %604 = vmatpush2.msra.mxu0 %v527
    %605 = vmatprep.subr.mxu0 0.0
    %606 = vmatpush2.msra.mxu0 %v526
    %607 = vmatprep.subr.mxu0 0.0
    %608 = vmatpush2.msra.mxu0 %v525
    %609 = vmatprep.subr.mxu0 0.0
    %610 = vmatpush2.msra.mxu0 %v524
    %611 = vmatprep.mubr.f32.mxu0 %v507
    %612 = vmatmul.mubr.f32.gmra.mxu0 %v412
    %v613 = vpop.f32.mrf.mxu0
    %v614 = vadd.f32 %v545, %v613
    %v615 = vpop.f32.mrf.mxu0
    %616 = vdwg.mxu0
    %617 = vst [vmem:[#allocation10] sm:$0xff] %v614
    // Predicated region
    $region46: #{tpu_custom_call.1} parent=1 // pred_check
      _
    $region47: #{tpu_custom_call.1} parent=1 // pred_check_branch
      %619 = sbr.rel (0) target = $region49
    $region48: #{tpu_custom_call.1} parent=1 // pred_region
      %s621 = ssub.s32 128, 128
      %622 = vsyncadd [#allocation4], %s621
      %s624 = sshll.u32 [#allocation10], 4
      %s625 = int_to_ptr.vmem [resolvable:$true] %s624
      %627 = dma.vmem_to_hbm [thread:$0]  %s625, 128, %s7, [#allocation4]
    $region49: #{tpu_custom_call.1} parent=1 // pred_fallthru
      _
    // Predicated region
    $region50: #{tpu_custom_call.1} parent=1 // pred_check
      _
    $region51: #{tpu_custom_call.1} parent=1 // pred_check_branch
      %629 = sbr.rel (0) target = $region53
    $region52: #{tpu_custom_call.1} parent=1 // pred_region
      %630 = dma.done [#allocation4], 128
    $region53: #{tpu_custom_call.1} parent=1 // pred_fallthru
      _
    %631 = vsyncpa [#allocation3], 1
    %632 = vsyncpa [#allocation6], 1
    %633 = vsyncpa [#allocation9], 1
    %634 = vsyncpa [#allocation4], 1

</llo_original>
